<compile_context>
chip_gen: v7x
topology: tpu7x:2x2x1
jax: 0.10.0
libtpu: 0.0.40
codegen_flags: <defaults>
</compile_context>

<pallas_src>
import math
import functools

import jax
import jax.numpy as jnp
from jax.experimental import pallas as pl
from jax.experimental.pallas import tpu as pltpu


def _soft_wing_kernel(pred_ref, true_ref, out_ref, acc_ref, *,
                      omega1, omega2, inv_eps, B_const, inv_batch):
    step = pl.program_id(0)

    @pl.when(step == 0)
    def _init():
        acc_ref[...] = jnp.zeros_like(acc_ref)

    # upcast BEFORE the subtraction (avoids cancellation if inputs are bf16)
    p = pred_ref[...].astype(jnp.float32)
    t = true_ref[...].astype(jnp.float32)
    diff = jnp.abs(p - t)

    nonlinear = omega2 * jnp.log(1.0 + diff * inv_eps) + B_const
    losses = jnp.where(diff < omega1, diff, nonlinear)

    # pure VPU accumulate into a tile-shaped f32 accumulator (no per-step
    # cross-lane reduce, no per-step scalar store)
    acc_ref[...] += losses

    @pl.when(step == pl.num_programs(0) - 1)
    def _finalize():
        out_ref[0, 0] = jnp.sum(acc_ref[...]) * inv_batch


def soft_wing_loss(y_pred, y_true, omega1=2.0, omega2=20.0, epsilon=0.5,
                   max_block_rows=512):
    """JAX/Pallas equivalent of SoftWingLoss.forward. Returns a scalar f32."""
    assert y_pred.shape == y_true.shape
    batch = y_pred.shape[0]
    B_const = omega1 - omega2 * math.log(1.0 + omega1 / epsilon)

    LANE = 128      # lane-dense last dim (unmasked vld/vst)
    SUBLANE = 8

    total = math.prod(y_pred.shape)
    rows = -(-total // LANE)                              # ceil
    rows_aligned = -(-rows // SUBLANE) * SUBLANE          # multiple of 8
    block_rows = min(int(max_block_rows), rows_aligned)
    block_rows = -(-block_rows // SUBLANE) * SUBLANE      # multiple of 8
    rows_padded = -(-rows // block_rows) * block_rows     # multiple of block
    pad = rows_padded * LANE - total

    pred_flat = y_pred.reshape(-1)
    true_flat = y_true.reshape(-1)
    if pad:
        # zero padding is exact: diff = 0 falls in the |x| < omega1 branch
        pred_flat = jnp.pad(pred_flat, (0, pad))
        true_flat = jnp.pad(true_flat, (0, pad))
    pred2d = pred_flat.reshape(rows_padded, LANE)
    true2d = true_flat.reshape(rows_padded, LANE)

    grid = (rows_padded // block_rows,)

    kernel = functools.partial(
        _soft_wing_kernel,
        omega1=float(omega1),
        omega2=float(omega2),
        inv_eps=float(1.0 / epsilon),   # multiply instead of divide (no 2nd EUP op)
        B_const=float(B_const),
        inv_batch=float(1.0 / batch),
    )

    out = pl.pallas_call(
        kernel,
        out_shape=jax.ShapeDtypeStruct((1, 1), jnp.float32),
        grid=grid,
        in_specs=[
            pl.BlockSpec((block_rows, LANE), lambda i: (i, 0)),
            pl.BlockSpec((block_rows, LANE), lambda i: (i, 0)),
        ],
        out_specs=pl.BlockSpec((1, 1), lambda i: (0, 0),
                               memory_space=pltpu.MemorySpace.SMEM),
        scratch_shapes=[pltpu.VMEM((block_rows, LANE), jnp.float32)],
        compiler_params=pltpu.CompilerParams(
            dimension_semantics=("arbitrary",),      # reduction axis
            vmem_limit_bytes=32 * 1024 * 1024,       # portable incl. v7x
        ),
    )(pred2d, true2d)
    # TODO(synk): on v7x, a 2-TC split (per-core partial sums reduced in the
    # wrapper) would recover full-chip HBM bandwidth for very large inputs.
    return out[0, 0]


def _reference(y_pred, y_true, omega1=2.0, omega2=20.0, epsilon=0.5):
    B_const = omega1 - omega2 * math.log(1.0 + omega1 / epsilon)
    diff = jnp.abs(y_pred.astype(jnp.float32) - y_true.astype(jnp.float32))
    losses = jnp.where(diff < omega1, diff,
                       omega2 * jnp.log(1.0 + diff / epsilon) + B_const)
    return jnp.mean(jnp.sum(losses.reshape(y_pred.shape[0], -1), axis=1), axis=0)


if __name__ == "__main__":
    key = jax.random.PRNGKey(0)
    k1, k2, k3, k4 = jax.random.split(key, 4)

    # Case 1: small landmark problem (single grid step), values spread so both
    # branches of the piecewise loss are exercised.
    B, K, D = 2, 8, 2
    y_pred = jax.random.normal(k1, (B, K, D), dtype=jnp.float32) * 3.0
    y_true = jax.random.normal(k2, (B, K, D), dtype=jnp.float32) * 3.0
    loss = soft_wing_loss(y_pred, y_true)
    jax.block_until_ready(loss)
    ref = _reference(y_pred, y_true)
    assert jnp.allclose(loss, ref, rtol=1e-5, atol=1e-4), (loss, ref)

    # Case 2: 98-landmark face, small block override to force grid > 1 and
    # exercise the accumulator init/finalize path.
    B2, K2, D2 = 8, 98, 2
    y_pred2 = jax.random.normal(k3, (B2, K2, D2), dtype=jnp.float32) * 3.0
    y_true2 = jax.random.normal(k4, (B2, K2, D2), dtype=jnp.float32) * 3.0
    loss2 = soft_wing_loss(y_pred2, y_true2, max_block_rows=8)
    jax.block_until_ready(loss2)
    ref2 = _reference(y_pred2, y_true2)
    assert jnp.allclose(loss2, ref2, rtol=1e-5, atol=1e-4), (loss2, ref2)

    print("KERNEL_OK")
</pallas_src>

<mosaic_0001>
module attributes {stable_mosaic.version = 11 : i64} {
  func.func @_soft_wing_kernel(%arg0: i32, %arg1: memref<8x128xf32, #tpu.memory_space<vmem>>, %arg2: memref<8x128xf32, #tpu.memory_space<vmem>>, %arg3: memref<1x1xf32, #tpu.memory_space<smem>>, %arg4: memref<8x128xf32, #tpu.memory_space<vmem>>) attributes {dimension_semantics = [#tpu.dimension_semantics<arbitrary>], iteration_bounds = array<i64: 1>, scalar_prefetch = 0 : i64, scratch_operands = 1 : i64, tpu.core_type = #tpu.core_type<tc>, window_params = [{transform_indices = @transform_0, window_bounds = array<i64: 8, 128>}, {transform_indices = @transform_1, window_bounds = array<i64: 8, 128>}, {transform_indices = @transform_2, window_bounds = array<i64: 1, 1>}]} {
    %c0_i32 = arith.constant 0 : i32
    %0 = arith.cmpi eq, %arg0, %c0_i32 : i32
    %1 = arith.extui %0 : i1 to i32
    %c0_i32_0 = arith.constant 0 : i32
    %2 = arith.cmpi ne, %1, %c0_i32_0 : i32
    scf.if %2 {
      %cst_14 = arith.constant 0.000000e+00 : f32
      %25 = vector.broadcast %cst_14 : f32 to vector<8x128xf32>
      %c0_15 = arith.constant 0 : index
      %c0_16 = arith.constant 0 : index
      %26 = vector.load %arg4[%c0_15, %c0_16] : memref<8x128xf32, #tpu.memory_space<vmem>>, vector<8x128xf32>
      tpu.vector_store %arg4[%c0_15, %c0_16], %25 {strides = array<i32>} : memref<8x128xf32, #tpu.memory_space<vmem>>, vector<8x128xf32>,
    } else {
    }
    %c0 = arith.constant 0 : index
    %c0_1 = arith.constant 0 : index
    %3 = vector.load %arg1[%c0, %c0_1] : memref<8x128xf32, #tpu.memory_space<vmem>>, vector<8x128xf32>
    %c0_2 = arith.constant 0 : index
    %c0_3 = arith.constant 0 : index
    %4 = vector.load %arg2[%c0_2, %c0_3] : memref<8x128xf32, #tpu.memory_space<vmem>>, vector<8x128xf32>
    %5 = arith.subf %3, %4 : vector<8x128xf32>
    %6 = math.absf %5 : vector<8x128xf32>
    %cst = arith.constant 2.000000e+00 : f32
    %7 = vector.broadcast %cst : f32 to vector<8x128xf32>
    %8 = arith.mulf %6, %7 : vector<8x128xf32>
    %cst_4 = arith.constant 1.000000e+00 : f32
    %9 = vector.broadcast %cst_4 : f32 to vector<8x128xf32>
    %10 = arith.addf %9, %8 : vector<8x128xf32>
    %11 = math.log %10 : vector<8x128xf32>
    %cst_5 = arith.constant 2.000000e+01 : f32
    %12 = vector.broadcast %cst_5 : f32 to vector<8x128xf32>
    %13 = arith.mulf %12, %11 : vector<8x128xf32>
    %cst_6 = arith.constant -30.1887589 : f32
    %14 = vector.broadcast %cst_6 : f32 to vector<8x128xf32>
    %15 = arith.addf %13, %14 : vector<8x128xf32>
    %cst_7 = arith.constant 2.000000e+00 : f32
    %16 = vector.broadcast %cst_7 : f32 to vector<8x128xf32>
    %17 = arith.cmpf olt, %6, %16 : vector<8x128xf32>
    %18 = arith.select %17, %6, %15 : vector<8x128xi1>, vector<8x128xf32>
    %c0_8 = arith.constant 0 : index
    %c0_9 = arith.constant 0 : index
    %19 = vector.load %arg4[%c0_8, %c0_9] : memref<8x128xf32, #tpu.memory_space<vmem>>, vector<8x128xf32>
    %20 = arith.addf %19, %18 : vector<8x128xf32>
    %c0_10 = arith.constant 0 : index
    %c0_11 = arith.constant 0 : index
    %21 = vector.load %arg4[%c0_10, %c0_11] : memref<8x128xf32, #tpu.memory_space<vmem>>, vector<8x128xf32>
    tpu.vector_store %arg4[%c0_10, %c0_11], %20 {strides = array<i32>} : memref<8x128xf32, #tpu.memory_space<vmem>>, vector<8x128xf32>,
    %c0_i32_12 = arith.constant 0 : i32
    %22 = arith.cmpi eq, %arg0, %c0_i32_12 : i32
    %23 = arith.extui %22 : i1 to i32
    %c0_i32_13 = arith.constant 0 : i32
    %24 = arith.cmpi ne, %23, %c0_i32_13 : i32
    scf.if %24 {
      %c0_14 = arith.constant 0 : index
      %c0_15 = arith.constant 0 : index
      %25 = vector.load %arg4[%c0_14, %c0_15] : memref<8x128xf32, #tpu.memory_space<vmem>>, vector<8x128xf32>
      %26 = vector.shape_cast %25 : vector<8x128xf32> to vector<1x8x128xf32>
      %cst_16 = arith.constant dense<0.000000e+00> : vector<1xf32>
      %27 = vector.multi_reduction <add>, %26, %cst_16 [1, 2] : vector<1x8x128xf32> to vector<1xf32>
      %28 = vector.shape_cast %27 : vector<1xf32> to vector<1x1x1xf32>
      %29 = vector.extract %28[0, 0, 0] : f32 from vector<1x1x1xf32>
      %cst_17 = arith.constant 5.000000e-01 : f32
      %30 = arith.mulf %29, %cst_17 : f32
      %c0_18 = arith.constant 0 : index
      %c0_19 = arith.constant 0 : index
      %31 = memref.load %arg3[%c0_18, %c0_19] : memref<1x1xf32, #tpu.memory_space<smem>>
      memref.store %30, %arg3[%c0_18, %c0_19] : memref<1x1xf32, #tpu.memory_space<smem>>
    } else {
    }
    return
  }
  func.func @transform_0(%arg0: i32) -> (i32, i32) {
    %c0_i32 = arith.constant 0 : i32
    %c0_i32_0 = arith.constant 0 : i32
    return %arg0, %c0_i32 : i32, i32
  }
  func.func @transform_1(%arg0: i32) -> (i32, i32) {
    %c0_i32 = arith.constant 0 : i32
    %c0_i32_0 = arith.constant 0 : i32
    return %arg0, %c0_i32 : i32, i32
  }
  func.func @transform_2(%arg0: i32) -> (i32, i32) {
    %c0_i32 = arith.constant 0 : i32
    %c0_i32_0 = arith.constant 0 : i32
    %c0_i32_1 = arith.constant 0 : i32
    return %c0_i32, %c0_i32_0 : i32, i32
  }
}

</mosaic_0001>

<llo_original>
// kernel: tpu_custom_call.1
$region0: #{tpu_custom_call.1}
  #allocation0 [shape = 'u32[]', space=smem, size = 0x4, offset = 0x4, fixed_abs, tag = 'smem constant byte address 0x4 - core index']
  #allocation1 [shape = 'u32[144,128]{1,0:T(1,128)}', space=vmem, size = 0x12000, scoped, tag = 'internal scratch']
  #allocation2 [shape = 'f32[8,128]{1,0:T(8,128)}', space=vmem, size = 0x1000, scoped, tag = 'scratch operand']
  %s0 = inlined_call_operand.hbm [shape: f32[8,128], index: 0, kind: input, shape index: {}]
  %s1 = inlined_call_operand.hbm [shape: f32[8,128], index: 1, kind: input, shape index: {}]
  %s2 = inlined_call_operand.hbm [shape: f32[1,1], index: 2, kind: output, shape index: {}]
  %s3 = sld [smem:[#allocation0]]
  $region34: #{tpu_custom_call.1} parent=0
    _
  %s5 = ssub.s32 1, %s3
  %s6 = scalar_select 0, %s5, %s3
  $region1: #{tpu_custom_call.1} parent=0
    #allocation3 [shape = 'u8[4096]{0}', space=vmem, size = 0x1000, scoped, tag = 'input window, operand 0, single buffered']
    #allocation4 [shape = 's32[1]{0}', space=sflag, size = 0x4, scoped, tag = 'scoped memory for tpu_custom_call.1']
    #allocation5 [shape = 's32[1]{0}', space=sflag, size = 0x4, scoped, tag = 'scoped memory for tpu_custom_call.1']
    #allocation6 [shape = 'u8[4096]{0}', space=vmem, size = 0x1000, scoped, tag = 'input window, operand 1, single buffered']
    #allocation7 [shape = 's32[1]{0}', space=sflag, size = 0x4, scoped, tag = 'scoped memory for tpu_custom_call.1']
    #allocation8 [shape = 'u8[512]{0}', space=smem, size = 0x200, scoped, tag = 'output window, operand 0, single buffered']
    %7 = vsyncpa [#allocation4], 0
    %8 = vsyncpa [#allocation7], 0
    %9 = vsyncpa [#allocation5], 0
    // Predicated region
    $region2: #{tpu_custom_call.1} parent=1 // pred_check
      _
    $region3: #{tpu_custom_call.1} parent=1 // pred_check_branch
      %11 = sbr.rel (0) target = $region5
    $region4: #{tpu_custom_call.1} parent=1 // pred_region
      %s13 = ssub.s32 128, 128
      %14 = vsyncadd [#allocation4], %s13
      %s16 = sshll.u32 [#allocation3], 4
      %s17 = int_to_ptr.vmem [resolvable:$true] %s16
      %19 = dma.hbm_to_vmem [thread:$0]  %s0, 128, %s17, [#allocation4]
    $region5: #{tpu_custom_call.1} parent=1 // pred_fallthru
      _
    // Predicated region
    $region6: #{tpu_custom_call.1} parent=1 // pred_check
      _
    $region7: #{tpu_custom_call.1} parent=1 // pred_check_branch
      %21 = sbr.rel (0) target = $region9
    $region8: #{tpu_custom_call.1} parent=1 // pred_region
      %s23 = ssub.s32 128, 128
      %24 = vsyncadd [#allocation7], %s23
      %s26 = sshll.u32 [#allocation6], 4
      %s27 = int_to_ptr.vmem [resolvable:$true] %s26
      %29 = dma.hbm_to_vmem [thread:$0]  %s1, 128, %s27, [#allocation7]
    $region9: #{tpu_custom_call.1} parent=1 // pred_fallthru
      _
    // Predicated region
    $region10: #{tpu_custom_call.1} parent=1 // pred_check
      _
    $region11: #{tpu_custom_call.1} parent=1 // pred_check_branch
      %31 = sbr.rel (0) target = $region13
    $region12: #{tpu_custom_call.1} parent=1 // pred_region
      %32 = dma.done [#allocation4], 128
    $region13: #{tpu_custom_call.1} parent=1 // pred_fallthru
      _
    // Predicated region
    $region14: #{tpu_custom_call.1} parent=1 // pred_check
      _
    $region15: #{tpu_custom_call.1} parent=1 // pred_check_branch
      %34 = sbr.rel (0) target = $region17
    $region16: #{tpu_custom_call.1} parent=1 // pred_region
      %35 = dma.done [#allocation7], 128
    $region17: #{tpu_custom_call.1} parent=1 // pred_fallthru
      _
    %p36 = scmp.eq.s32.totalorder 0, 0
    // Predicated region
    $region18: #{tpu_custom_call.1} parent=1 // pred_check
      %p37 = pneg %p36
    $region19: #{tpu_custom_call.1} parent=1 // pred_check_branch
      %39 = sbr.rel (%p37) target = $region21
    $region20: #{tpu_custom_call.1} parent=1 // pred_region
      %40 = vst [vmem:[#allocation2] sm:$0xff] 0.0
    $region21: #{tpu_custom_call.1} parent=1 // pred_fallthru
      _
    %v41 = vld [vmem:[#allocation3] sm:$0xff]
    %v42 = vld [vmem:[#allocation6] sm:$0xff]
    %v43 = vsub.f32 %v41, %v42
    %v44 = vand.u32 2147483647, %v43
    %v45 = vmul.f32 %v44, 2.0
    %v46 = vadd.f32 %v45, 1.0
    %v47 = vlog2.pop %v46
    %v48 = vmul.f32 %v47, 0.6931472
    %v49 = vmul.f32 %v48, 20.0
    %v50 = vadd.f32 %v49, -30.188759
    %vm51 = vcmp.lt.f32.partialorder %v44, 2.0
    %v52 = vsel %vm51, %v44, %v50
    %v53 = vld [vmem:[#allocation2] sm:$0xff]
    %v54 = vadd.f32 %v53, %v52
    %55 = vst [vmem:[#allocation2] sm:$0xff] %v54
    // Predicated region
    $region22: #{tpu_custom_call.1} parent=1 // pred_check
      %p56 = pneg %p36
    $region23: #{tpu_custom_call.1} parent=1 // pred_check_branch
      %58 = sbr.rel (%p56) target = $region25
    $region24: #{tpu_custom_call.1} parent=1 // pred_region
      %v59 = vld [vmem:[#allocation2] sm:$0xff]
      %60 = vadd.xlane.f32.xlu0 %v59
      %v61 = vpop.xlane.xlu0 %60
      %v62 = vrot.slane %v61, 4
      %v63 = vadd.f32 %v61, %v62
      %v64 = vrot.slane %v63, 2
      %v65 = vadd.f32 %v63, %v64
      %v66 = vrot.slane %v65, 1
      %v67 = vadd.f32 %v65, %v66
      %s68 = vtos %v67
      %s69 = smul.f32 %s68, 0.5
      %s70 = scalar_lea.smem [#allocation8], 0
      %71 = sst [smem:[%s70]] %s69
    $region25: #{tpu_custom_call.1} parent=1 // pred_fallthru
      _
    // Predicated region
    $region26: #{tpu_custom_call.1} parent=1 // pred_check
      _
    $region27: #{tpu_custom_call.1} parent=1 // pred_check_branch
      %73 = sbr.rel (0) target = $region29
    $region28: #{tpu_custom_call.1} parent=1 // pred_region
      %s75 = ssub.s32 16, 16
      %76 = vsyncadd [#allocation5], %s75
      %79 = dma.smem_to_hbm [#allocation8], 16, %s2, [#allocation5]
    $region29: #{tpu_custom_call.1} parent=1 // pred_fallthru
      _
    // Predicated region
    $region30: #{tpu_custom_call.1} parent=1 // pred_check
      _
    $region31: #{tpu_custom_call.1} parent=1 // pred_check_branch
      %81 = sbr.rel (0) target = $region33
    $region32: #{tpu_custom_call.1} parent=1 // pred_region
      %82 = dma.done [#allocation5], 16
    $region33: #{tpu_custom_call.1} parent=1 // pred_fallthru
      _
    %83 = sfence
    %84 = vsyncpa [#allocation4], 1
    %85 = vsyncpa [#allocation7], 1
    %86 = vsyncpa [#allocation5], 1

</llo_original>
